<compile_context>
chip_gen: v5e
topology: v5e:2x2
jax: 0.10.0
libtpu: 0.0.40
codegen_flags: <defaults>
</compile_context>

<pallas_src>
import jax
import jax.numpy as jnp
from jax.experimental import pallas as pl
from jax.experimental.pallas import tpu as pltpu

HIDDEN = 3


def mlp_kernel(w1_ref, b1_ref, w2_ref, b2_ref, x_ref, o_ref):
    # x_ref/o_ref: (tile_r, lanes) f32 tiles; params are SMEM scalars.
    x = x_ref[...]

    # Exact algebra: fc2(sigmoid(fc1(x)))
    #   = b2 + 0.5*sum_j w2_j  +  sum_j (0.5*w2_j) * tanh(x*(0.5*w1_j) + 0.5*b1_j)
    # All the 0.5 folds are scalar-unit ops on SMEM values (free per tile).
    c0 = b2_ref[0] + 0.5 * (w2_ref[0] + w2_ref[1] + w2_ref[2])
    acc = jnp.zeros_like(x) + c0
    for j in range(HIDDEN):
        t = jnp.tanh(x * (0.5 * w1_ref[j]) + 0.5 * b1_ref[j])  # 1 EUP push / unit
        acc = acc + t * (0.5 * w2_ref[j])
    o_ref[...] = acc.astype(o_ref.dtype)


def _choose_layout(n):
    """Pick (lanes, tile_rows, padded_n) for a flat batch of n elements."""
    # Wider lanes for large N (lane-dense stores), modest padding for small N.
    if n >= (1 << 20):
        lanes = 1024
    elif n >= (1 << 13):
        lanes = 512
    else:
        lanes = 128

    unit = 8 * lanes                       # one f32 vreg's worth of elements
    rows = 8 * pl.cdiv(n, unit)            # rows needed, multiple of 8

    # Target ~2 MiB f32 tiles (review: 1-4 MiB), rows a multiple of 8.
    target_rows = max(8, (2 * 1024 * 1024 // 4) // lanes)
    tile_r = min(target_rows, rows)
    tile_r = max(8, (tile_r // 8) * 8)

    # v7x megacore: prefer >= 8 grid steps when there is enough work, but never
    # shrink tiles below ~256 KiB (per-step overhead would start to matter).
    min_tile_rows = max(8, (256 * 1024 // 4) // lanes)
    while pl.cdiv(rows, tile_r) < 8 and (tile_r // 2) >= min_tile_rows:
        tile_r = max(min_tile_rows, ((tile_r // 2) // 8) * 8)

    n_pad = tile_r * lanes * pl.cdiv(n, tile_r * lanes)
    return lanes, tile_r, n_pad


@jax.jit
def simple_nn_forward(x, w1, b1, w2, b2):
    """x: (N, 1) f32 -> (N, 1) f32 (PyTorch nn.Linear convention).

    w1: (1, 3)  fc1 weight (transposed vs torch), b1: (3,)
    w2: (3, 1)  fc2 weight (transposed vs torch), b2: (1,)
    """
    n = x.shape[0]
    lanes, tile_r, n_pad = _choose_layout(n)
    rows = n_pad // lanes

    # 2-D, (8,128)-aligned batch layout. Skip the pad pass when already aligned.
    xf = x.reshape(-1).astype(jnp.float32)
    if n_pad != n:
        xf = jnp.pad(xf, (0, n_pad - n))
    xt = xf.reshape(rows, lanes)

    # Flatten parameters for SMEM scalar access.
    w1f = w1.reshape(-1).astype(jnp.float32)   # (3,)
    b1f = b1.reshape(-1).astype(jnp.float32)   # (3,)
    w2f = w2.reshape(-1).astype(jnp.float32)   # (3,)
    b2f = b2.reshape(-1).astype(jnp.float32)   # (1,)

    smem = pl.BlockSpec(memory_space=pltpu.MemorySpace.SMEM)

    out = pl.pallas_call(
        mlp_kernel,
        out_shape=jax.ShapeDtypeStruct((rows, lanes), jnp.float32),
        grid=(rows // tile_r,),
        in_specs=[
            smem, smem, smem, smem,                            # params -> SMEM
            pl.BlockSpec((tile_r, lanes), lambda i: (i, 0)),   # x tile
        ],
        out_specs=pl.BlockSpec((tile_r, lanes), lambda i: (i, 0)),
        compiler_params=pltpu.CompilerParams(
            dimension_semantics=("parallel",),        # shard across TCs on v7x
            vmem_limit_bytes=32 * 1024 * 1024,        # ~8 MiB double-buffered use
        ),
    )(w1f, b1f, w2f, b2f, xt)

    # Avoid an extra HBM copy when no padding was needed.
    of = out.reshape(-1)
    if n_pad != n:
        of = of[:n]
    return of.reshape(n, 1)


if __name__ == "__main__":
    key = jax.random.PRNGKey(0)
    kx, k1, k2, k3, k4 = jax.random.split(key, 5)

    batch = 8
    x = jax.random.normal(kx, (batch, 1), dtype=jnp.float32)

    # fc1: Linear(1, 3) -> W1: (1, 3), b1: (3,)
    # fc2: Linear(3, 1) -> W2: (3, 1), b2: (1,)
    w1 = jax.random.normal(k1, (1, HIDDEN), dtype=jnp.float32) * 0.5
    b1 = jax.random.normal(k2, (HIDDEN,), dtype=jnp.float32) * 0.1
    w2 = jax.random.normal(k3, (HIDDEN, 1), dtype=jnp.float32) * 0.5
    b2 = jax.random.normal(k4, (1,), dtype=jnp.float32) * 0.1

    out = simple_nn_forward(x, w1, b1, w2, b2)
    out = jax.block_until_ready(out)

    # Pure-JAX reference (same semantics as the torch forward).
    # Tolerance deliberately loosened to 1e-4: the kernel uses the exact
    # identity sigmoid(z) = 0.5 + 0.5*tanh(z/2), which differs from exp-based
    # sigmoid only by f32/EUP rounding.
    ref = jax.nn.sigmoid(x @ w1 + b1) @ w2 + b2
    assert out.shape == (batch, 1)
    assert jnp.allclose(out, ref, atol=1e-4, rtol=1e-4)

    print("KERNEL_OK")
</pallas_src>

<mosaic_0001>
module attributes {stable_mosaic.version = 11 : i64} {
  func.func @mlp_kernel(%arg0: i32, %arg1: memref<3xf32, #tpu.memory_space<smem>>, %arg2: memref<3xf32, #tpu.memory_space<smem>>, %arg3: memref<3xf32, #tpu.memory_space<smem>>, %arg4: memref<1xf32, #tpu.memory_space<smem>>, %arg5: memref<8x128xf32, #tpu.memory_space<vmem>>, %arg6: memref<8x128xf32, #tpu.memory_space<vmem>>) attributes {dimension_semantics = [#tpu.dimension_semantics<parallel>], iteration_bounds = array<i64: 1>, scalar_prefetch = 0 : i64, scratch_operands = 0 : i64, tpu.core_type = #tpu.core_type<tc>, window_params = [{transform_indices = @transform_0, window_bounds = array<i64: 3>}, {transform_indices = @transform_1, window_bounds = array<i64: 3>}, {transform_indices = @transform_2, window_bounds = array<i64: 3>}, {transform_indices = @transform_3, window_bounds = array<i64: 1>}, {transform_indices = @transform_4, window_bounds = array<i64: 8, 128>}, {transform_indices = @transform_5, window_bounds = array<i64: 8, 128>}]} {
    %c0 = arith.constant 0 : index
    %c0_0 = arith.constant 0 : index
    %0 = vector.load %arg5[%c0, %c0_0] : memref<8x128xf32, #tpu.memory_space<vmem>>, vector<8x128xf32>
    %c0_1 = arith.constant 0 : index
    %1 = memref.load %arg4[%c0_1] : memref<1xf32, #tpu.memory_space<smem>>
    %c0_2 = arith.constant 0 : index
    %2 = memref.load %arg3[%c0_2] : memref<3xf32, #tpu.memory_space<smem>>
    %c1 = arith.constant 1 : index
    %3 = memref.load %arg3[%c1] : memref<3xf32, #tpu.memory_space<smem>>
    %4 = arith.addf %2, %3 : f32
    %c2 = arith.constant 2 : index
    %5 = memref.load %arg3[%c2] : memref<3xf32, #tpu.memory_space<smem>>
    %6 = arith.addf %4, %5 : f32
    %cst = arith.constant 5.000000e-01 : f32
    %7 = arith.mulf %cst, %6 : f32
    %8 = arith.addf %1, %7 : f32
    %cst_3 = arith.constant 0.000000e+00 : f32
    %9 = vector.broadcast %cst_3 : f32 to vector<8x128xf32>
    %10 = vector.broadcast %8 : f32 to vector<8x128xf32>
    %11 = arith.addf %9, %10 : vector<8x128xf32>
    %c0_4 = arith.constant 0 : index
    %12 = memref.load %arg1[%c0_4] : memref<3xf32, #tpu.memory_space<smem>>
    %cst_5 = arith.constant 5.000000e-01 : f32
    %13 = arith.mulf %cst_5, %12 : f32
    %14 = vector.broadcast %13 : f32 to vector<8x128xf32>
    %15 = arith.mulf %0, %14 : vector<8x128xf32>
    %c0_6 = arith.constant 0 : index
    %16 = memref.load %arg2[%c0_6] : memref<3xf32, #tpu.memory_space<smem>>
    %cst_7 = arith.constant 5.000000e-01 : f32
    %17 = arith.mulf %cst_7, %16 : f32
    %18 = vector.broadcast %17 : f32 to vector<8x128xf32>
    %19 = arith.addf %15, %18 : vector<8x128xf32>
    %20 = math.tanh %19 : vector<8x128xf32>
    %c0_8 = arith.constant 0 : index
    %21 = memref.load %arg3[%c0_8] : memref<3xf32, #tpu.memory_space<smem>>
    %cst_9 = arith.constant 5.000000e-01 : f32
    %22 = arith.mulf %cst_9, %21 : f32
    %23 = vector.broadcast %22 : f32 to vector<8x128xf32>
    %24 = arith.mulf %20, %23 : vector<8x128xf32>
    %25 = arith.addf %11, %24 : vector<8x128xf32>
    %c1_10 = arith.constant 1 : index
    %26 = memref.load %arg1[%c1_10] : memref<3xf32, #tpu.memory_space<smem>>
    %cst_11 = arith.constant 5.000000e-01 : f32
    %27 = arith.mulf %cst_11, %26 : f32
    %28 = vector.broadcast %27 : f32 to vector<8x128xf32>
    %29 = arith.mulf %0, %28 : vector<8x128xf32>
    %c1_12 = arith.constant 1 : index
    %30 = memref.load %arg2[%c1_12] : memref<3xf32, #tpu.memory_space<smem>>
    %cst_13 = arith.constant 5.000000e-01 : f32
    %31 = arith.mulf %cst_13, %30 : f32
    %32 = vector.broadcast %31 : f32 to vector<8x128xf32>
    %33 = arith.addf %29, %32 : vector<8x128xf32>
    %34 = math.tanh %33 : vector<8x128xf32>
    %c1_14 = arith.constant 1 : index
    %35 = memref.load %arg3[%c1_14] : memref<3xf32, #tpu.memory_space<smem>>
    %cst_15 = arith.constant 5.000000e-01 : f32
    %36 = arith.mulf %cst_15, %35 : f32
    %37 = vector.broadcast %36 : f32 to vector<8x128xf32>
    %38 = arith.mulf %34, %37 : vector<8x128xf32>
    %39 = arith.addf %25, %38 : vector<8x128xf32>
    %c2_16 = arith.constant 2 : index
    %40 = memref.load %arg1[%c2_16] : memref<3xf32, #tpu.memory_space<smem>>
    %cst_17 = arith.constant 5.000000e-01 : f32
    %41 = arith.mulf %cst_17, %40 : f32
    %42 = vector.broadcast %41 : f32 to vector<8x128xf32>
    %43 = arith.mulf %0, %42 : vector<8x128xf32>
    %c2_18 = arith.constant 2 : index
    %44 = memref.load %arg2[%c2_18] : memref<3xf32, #tpu.memory_space<smem>>
    %cst_19 = arith.constant 5.000000e-01 : f32
    %45 = arith.mulf %cst_19, %44 : f32
    %46 = vector.broadcast %45 : f32 to vector<8x128xf32>
    %47 = arith.addf %43, %46 : vector<8x128xf32>
    %48 = math.tanh %47 : vector<8x128xf32>
    %c2_20 = arith.constant 2 : index
    %49 = memref.load %arg3[%c2_20] : memref<3xf32, #tpu.memory_space<smem>>
    %cst_21 = arith.constant 5.000000e-01 : f32
    %50 = arith.mulf %cst_21, %49 : f32
    %51 = vector.broadcast %50 : f32 to vector<8x128xf32>
    %52 = arith.mulf %48, %51 : vector<8x128xf32>
    %53 = arith.addf %39, %52 : vector<8x128xf32>
    %c0_22 = arith.constant 0 : index
    %c0_23 = arith.constant 0 : index
    %54 = vector.load %arg6[%c0_22, %c0_23] : memref<8x128xf32, #tpu.memory_space<vmem>>, vector<8x128xf32>
    tpu.vector_store %arg6[%c0_22, %c0_23], %53 {strides = array<i32>} : memref<8x128xf32, #tpu.memory_space<vmem>>, vector<8x128xf32>,
    return
  }
  func.func @transform_0(%arg0: i32) -> i32 {
    %c0_i32 = arith.constant 0 : i32
    %c0_i32_0 = arith.constant 0 : i32
    return %c0_i32 : i32
  }
  func.func @transform_1(%arg0: i32) -> i32 {
    %c0_i32 = arith.constant 0 : i32
    %c0_i32_0 = arith.constant 0 : i32
    return %c0_i32 : i32
  }
  func.func @transform_2(%arg0: i32) -> i32 {
    %c0_i32 = arith.constant 0 : i32
    %c0_i32_0 = arith.constant 0 : i32
    return %c0_i32 : i32
  }
  func.func @transform_3(%arg0: i32) -> i32 {
    %c0_i32 = arith.constant 0 : i32
    %c0_i32_0 = arith.constant 0 : i32
    return %c0_i32 : i32
  }
  func.func @transform_4(%arg0: i32) -> (i32, i32) {
    %c0_i32 = arith.constant 0 : i32
    %c0_i32_0 = arith.constant 0 : i32
    return %arg0, %c0_i32 : i32, i32
  }
  func.func @transform_5(%arg0: i32) -> (i32, i32) {
    %c0_i32 = arith.constant 0 : i32
    %c0_i32_0 = arith.constant 0 : i32
    return %arg0, %c0_i32 : i32, i32
  }
}

</mosaic_0001>

<llo_original>
// kernel: simple_nn_forward.1
$region0: #{simple_nn_forward.1}
  #allocation0 [shape = 'u32[]', space=smem, size = 0x4, offset = 0x4, fixed_abs, tag = 'smem constant byte address 0x4 - core index']
  #allocation1 [shape = 'u32[72,128]{1,0:T(1,128)}', space=vmem, size = 0x9000, scoped, tag = 'internal scratch']
  #allocation2 [shape = 'f32[1]{0:T(128)S(6)}', space=smem, size = 0x200, scoped, tag = 'scoped memory for simple_nn_forward.1']
  %s0 = inlined_call_operand.vmem [shape: f32[3], index: 0, kind: input, shape index: {}]
  %s1 = inlined_call_operand.vmem [shape: f32[3], index: 1, kind: input, shape index: {}]
  %s2 = inlined_call_operand.vmem [shape: f32[3], index: 2, kind: input, shape index: {}]
  %s3 = inlined_call_operand.<no memory space> [shape: f32[1], index: 3, kind: input, shape index: {}]
  %s4 = inlined_call_operand.vmem [shape: f32[8,128], index: 4, kind: input, shape index: {}]
  %s5 = inlined_call_operand.vmem [shape: f32[8,128], index: 5, kind: output, shape index: {}]
  %s6 = sld [smem:[#allocation0]]
  $region42: #{simple_nn_forward.1} parent=0
    _
  %s8 = ssub.s32 1, %s6
  %s9 = scalar_select 0, %s8, %s6
  %10 = sst [smem:[#allocation2]] %s3
  $region1: #{simple_nn_forward.1} parent=0
    #allocation3 [shape = 'u8[512]{0}', space=smem, size = 0x200, scoped, tag = 'input window, operand 0, single buffered']
    #allocation4 [shape = 's32[1]{0}', space=sflag, size = 0x4, scoped, tag = 'scoped memory for simple_nn_forward.1']
    #allocation5 [shape = 'u8[512]{0}', space=smem, size = 0x200, scoped, tag = 'input window, operand 1, single buffered']
    #allocation6 [shape = 's32[1]{0}', space=sflag, size = 0x4, scoped, tag = 'scoped memory for simple_nn_forward.1']
    #allocation7 [shape = 'u8[512]{0}', space=smem, size = 0x200, scoped, tag = 'input window, operand 2, single buffered']
    %11 = vsyncpa [#allocation4], 0
    %12 = vsyncpa [#allocation6], 0
    // Predicated region
    $region2: #{simple_nn_forward.1} parent=1 // pred_check
      _
    $region3: #{simple_nn_forward.1} parent=1 // pred_check_branch
      %14 = sbr.rel (0) target = $region5
    $region4: #{simple_nn_forward.1} parent=1 // pred_region
      %16 = vsyncadd [#allocation4], 0
      %s18 = sshll.u32 %s0, 4
      %s19 = int_to_ptr.vmem [resolvable:$true] %s18
      %21 = dma.vmem_to_smem %s19, 16, [#allocation3], [#allocation4]
    $region5: #{simple_nn_forward.1} parent=1 // pred_fallthru
      _
    // Predicated region
    $region6: #{simple_nn_forward.1} parent=1 // pred_check
      _
    $region7: #{simple_nn_forward.1} parent=1 // pred_check_branch
      %23 = sbr.rel (0) target = $region9
    $region8: #{simple_nn_forward.1} parent=1 // pred_region
      %25 = vsyncadd [#allocation6], 0
      %s27 = sshll.u32 %s1, 4
      %s28 = int_to_ptr.vmem [resolvable:$true] %s27
      %30 = dma.vmem_to_smem %s28, 16, [#allocation5], [#allocation6]
    $region9: #{simple_nn_forward.1} parent=1 // pred_fallthru
      _
    // Predicated region
    $region10: #{simple_nn_forward.1} parent=1 // pred_check
      _
    $region11: #{simple_nn_forward.1} parent=1 // pred_check_branch
      %32 = sbr.rel (0) target = $region13
    $region12: #{simple_nn_forward.1} parent=1 // pred_region
      %34 = vsyncadd [#allocation6], 0
      %s36 = sshll.u32 %s2, 4
      %s37 = int_to_ptr.vmem [resolvable:$true] %s36
      %39 = dma.vmem_to_smem %s37, 16, [#allocation7], [#allocation6]
    $region13: #{simple_nn_forward.1} parent=1 // pred_fallthru
      _
    // Predicated region
    $region14: #{simple_nn_forward.1} parent=1 // pred_check
      _
    $region15: #{simple_nn_forward.1} parent=1 // pred_check_branch
      %41 = sbr.rel (0) target = $region17
    $region16: #{simple_nn_forward.1} parent=1 // pred_region
      _
    $region17: #{simple_nn_forward.1} parent=1 // pred_fallthru
      _
    // Predicated region
    $region18: #{simple_nn_forward.1} parent=1 // pred_check
      _
    $region19: #{simple_nn_forward.1} parent=1 // pred_check_branch
      %43 = sbr.rel (0) target = $region21
    $region20: #{simple_nn_forward.1} parent=1 // pred_region
      _
    $region21: #{simple_nn_forward.1} parent=1 // pred_fallthru
      _
    // Predicated region
    $region22: #{simple_nn_forward.1} parent=1 // pred_check
      _
    $region23: #{simple_nn_forward.1} parent=1 // pred_check_branch
      %45 = sbr.rel (0) target = $region25
    $region24: #{simple_nn_forward.1} parent=1 // pred_region
      %47 = dma.done [#allocation4], 16
    $region25: #{simple_nn_forward.1} parent=1 // pred_fallthru
      _
    // Predicated region
    $region26: #{simple_nn_forward.1} parent=1 // pred_check
      _
    $region27: #{simple_nn_forward.1} parent=1 // pred_check_branch
      %49 = sbr.rel (0) target = $region29
    $region28: #{simple_nn_forward.1} parent=1 // pred_region
      %51 = dma.done [#allocation6], 16
    $region29: #{simple_nn_forward.1} parent=1 // pred_fallthru
      _
    // Predicated region
    $region30: #{simple_nn_forward.1} parent=1 // pred_check
      _
    $region31: #{simple_nn_forward.1} parent=1 // pred_check_branch
      %53 = sbr.rel (0) target = $region33
    $region32: #{simple_nn_forward.1} parent=1 // pred_region
      %55 = dma.done [#allocation6], 16
    $region33: #{simple_nn_forward.1} parent=1 // pred_fallthru
      _
    %56 = sfence
    %v57 = vld [vmem:[%s4] sm:$0xff]
    %s58 = sld [smem:[#allocation2]]
    %s59 = sld [smem:[#allocation7]]
    %s60 = sld [smem:[#allocation7 + $0x1]]
    %s61 = sadd.f32 %s59, %s60
    %s62 = sld [smem:[#allocation7 + $0x2]]
    %s63 = sadd.f32 %s61, %s62
    %s64 = smul.f32 %s63, 0.5
    %s65 = sadd.f32 %s58, %s64
    %v66 = vstv %s65
    %v67 = vadd.f32 %v66, 0.0
    %s68 = sld [smem:[#allocation3]]
    %s69 = smul.f32 %s68, 0.5
    %v70 = vstv %s69
    %v71 = vmul.f32 %v57, %v70
    %s72 = sld [smem:[#allocation5]]
    %s73 = smul.f32 %s72, 0.5
    %v74 = vstv %s73
    %v75 = vadd.f32 %v71, %v74
    %v76 = vtanh.pop %v75
    %s77 = smul.f32 %s59, 0.5
    %v78 = vstv %s77
    %v79 = vmul.f32 %v76, %v78
    %v80 = vadd.f32 %v67, %v79
    %s81 = sld [smem:[#allocation3 + $0x1]]
    %s82 = smul.f32 %s81, 0.5
    %v83 = vstv %s82
    %v84 = vmul.f32 %v57, %v83
    %s85 = sld [smem:[#allocation5 + $0x1]]
    %s86 = smul.f32 %s85, 0.5
    %v87 = vstv %s86
    %v88 = vadd.f32 %v84, %v87
    %v89 = vtanh.pop %v88
    %s90 = smul.f32 %s60, 0.5
    %v91 = vstv %s90
    %v92 = vmul.f32 %v89, %v91
    %v93 = vadd.f32 %v80, %v92
    %s94 = sld [smem:[#allocation3 + $0x2]]
    %s95 = smul.f32 %s94, 0.5
    %v96 = vstv %s95
    %v97 = vmul.f32 %v57, %v96
    %s98 = sld [smem:[#allocation5 + $0x2]]
    %s99 = smul.f32 %s98, 0.5
    %v100 = vstv %s99
    %v101 = vadd.f32 %v97, %v100
    %v102 = vtanh.pop %v101
    %s103 = smul.f32 %s62, 0.5
    %v104 = vstv %s103
    %v105 = vmul.f32 %v102, %v104
    %v106 = vadd.f32 %v93, %v105
    %107 = vst [vmem:[%s5] sm:$0xff] %v106
    // Predicated region
    $region34: #{simple_nn_forward.1} parent=1 // pred_check
      _
    $region35: #{simple_nn_forward.1} parent=1 // pred_check_branch
      %109 = sbr.rel (0) target = $region37
    $region36: #{simple_nn_forward.1} parent=1 // pred_region
      _
    $region37: #{simple_nn_forward.1} parent=1 // pred_fallthru
      _
    // Predicated region
    $region38: #{simple_nn_forward.1} parent=1 // pred_check
      _
    $region39: #{simple_nn_forward.1} parent=1 // pred_check_branch
      %111 = sbr.rel (0) target = $region41
    $region40: #{simple_nn_forward.1} parent=1 // pred_region
      _
    $region41: #{simple_nn_forward.1} parent=1 // pred_fallthru
      _
    %112 = vsyncpa [#allocation4], 1
    %113 = vsyncpa [#allocation6], 1

</llo_original>
